<compile_context>
chip_gen: v7x
topology: tpu7x:2x2x1
jax: 0.10.0
libtpu: 0.0.40
codegen_flags: <defaults>
</compile_context>

<pallas_src>
import functools

import jax
import jax.numpy as jnp
from jax.experimental import pallas as pl
from jax.experimental.pallas import tpu as pltpu


# --------------------------- Stage 1: M = x @ T --------------------------- #
def _project_kernel(x_ref, t_ref, m_ref):
    m_ref[...] = jnp.dot(
        x_ref[...], t_ref[...], preferred_element_type=jnp.float32
    ).astype(m_ref.dtype)


def _project(x, t_flat, *, tm, out_dtype):
    n, f = x.shape
    bc = t_flat.shape[1]
    return pl.pallas_call(
        _project_kernel,
        out_shape=jax.ShapeDtypeStruct((n, bc), out_dtype),
        grid_spec=pltpu.PrefetchScalarGridSpec(
            num_scalar_prefetch=0,
            grid=(n // tm,),
            in_specs=[
                pl.BlockSpec((tm, f), lambda i: (i, 0)),
                pl.BlockSpec((f, bc), lambda i: (0, 0)),
            ],
            out_specs=pl.BlockSpec((tm, bc), lambda i: (i, 0)),
        ),
        compiler_params=pltpu.CompilerParams(
            dimension_semantics=("parallel",)),
    )(x, t_flat)


# ------------------- Stage 2: symmetric pairwise exp-sums ------------------ #
def _pairwise_kernel(bi_tbl, bj_tbl, valid_tbl, mi_ref, mj_ref, nsel_ref,
                     out_ref, *, block_rows, out_features, chunk_rows):
    c = pl.program_id(0)           # which half of the triangle (parallel)
    t = pl.program_id(1)           # tile-pair step inside the half (arbitrary)

    @pl.when(t == 0)
    def _init():                   # zero this half's resident (N, B) slab once
        out_ref[...] = jnp.zeros_like(out_ref)

    @pl.when(valid_tbl[c, t] != 0)
    def _compute():
        ti = block_rows
        cj = chunk_rows
        bi = bi_tbl[c, t]
        bj = bj_tbl[c, t]

        m_i = mi_ref[...]                      # (ti, B*C) compute dtype
        nsel = nsel_ref[...]                   # (B*C, B), -1 block diagonal
        bc = m_i.shape[-1]

        row_i = jnp.zeros((ti, out_features), jnp.float32)
        row_j_parts = []
        # Chunk M_j so the (ti, cj, B*C) diff stays near the vreg file instead
        # of a multi-MiB VMEM round-trip through the store slot.
        for k in range(ti // cj):
            m_jc = mj_ref[k * cj:(k + 1) * cj, :]                   # (cj, B*C)
            diff = jnp.abs(m_i[:, None, :] - m_jc[None, :, :])      # (ti,cj,B*C)
            # One MXU matmul both reduces over C and negates (selector = -1s).
            neg_norm = jnp.dot(diff.reshape(ti * cj, bc), nsel,
                               preferred_element_type=jnp.float32)  # (ti*cj, B)
            e = jnp.exp(neg_norm).reshape(ti, cj, out_features)
            row_i = row_i + e.sum(axis=1)                           # (ti, B)
            row_j_parts.append(e.sum(axis=0))                       # (cj, B)
        row_j = (jnp.concatenate(row_j_parts, axis=0)
                 if len(row_j_parts) > 1 else row_j_parts[0])

        i_start = pl.multiple_of(bi * ti, ti)
        out_ref[pl.ds(i_start, ti), :] += row_i

        @pl.when(bj != bi)        # symmetry: mirror tile; diagonal counted once
        def _scatter_j():
            j_start = pl.multiple_of(bj * ti, ti)
            out_ref[pl.ds(j_start, ti), :] += row_j


# --------------------------------- wrapper -------------------------------- #
def _pick_tile(n, preferred):
    for cand in (preferred, 512, 256, 128, 64, 32, 16, 8):
        if 0 < cand <= n and n % cand == 0 and (cand % 8 == 0 or cand == n):
            return cand
    return n


def minibatch_discrimination(x, T, *, mean=False, row_tile=128,
                             chunk_rows=None, compute_dtype=jnp.bfloat16):
    """Forward pass of MinibatchDiscrimination.

    x: (..., in_features); T: (in_features, out_features, kernel_dims).
    Returns (N, in_features + out_features) with N = prod(leading dims of x).

    row_tile:   pairwise tile edge.  128 fits v7x's 64 MiB VMEM/TC; 256 is also
                fine on v5e/v6e (128 MiB) and amortizes grid overhead a bit.
    chunk_rows: inner M_j chunk (8-16); keeps the |diff| chunk out of VMEM.
    compute_dtype: bf16 (default) halves VALU/MXU/EUP/spill work on v6e/v7x;
                use jnp.float32 for an exact path (and for v5e's f32-only VPU).
    """
    in_features, out_features, kernel_dims = T.shape
    x = x.reshape(-1, in_features).astype(jnp.float32)
    n = x.shape[0]
    bc = out_features * kernel_dims
    compute_dtype = jnp.dtype(compute_dtype)

    # TODO(synk): pad N to a multiple of 8 (with a masked exp-sum) for ragged
    # batch sizes; currently the row tile just falls back to ti == N.
    ti = _pick_tile(n, row_tile)
    if chunk_rows is None:
        chunk_rows = 16 if ti % 16 == 0 else (8 if ti % 8 == 0 else ti)
    cj = min(chunk_rows, ti)
    assert ti % cj == 0, (ti, cj)

    # Stage 1: M = x @ T_flat once on the MXU, emitted directly in the dtype
    # stage 2 consumes; tile decoupled from the pairwise row tile.
    tm = _pick_tile(n, 512)
    t_flat = T.reshape(in_features, bc).astype(compute_dtype)
    m = _project(x.astype(compute_dtype), t_flat, tm=tm,
                 out_dtype=compute_dtype)                    # (N, B*C)

    # Block-diagonal selector with -1 entries: column b sums (and negates)
    # C-chunk b, so the kernel applies exp() with no extra negate pass.
    neg_sel = -(
        jnp.arange(bc, dtype=jnp.int32)[:, None] // kernel_dims
        == jnp.arange(out_features, dtype=jnp.int32)[None, :]
    ).astype(compute_dtype)                                  # (B*C, B)

    # Upper-triangle tile pairs, interleaved into two equal halves so the
    # leading "parallel" grid axis keeps both v7x TensorCores equally busy
    # (every pair is the same ti x ti tile => equal counts == balanced load).
    g = n // ti
    pairs = [(i, j) for i in range(g) for j in range(i, g)]
    half = (len(pairs) + 1) // 2
    tbl_i = [[0] * half for _ in range(2)]
    tbl_j = [[0] * half for _ in range(2)]
    tbl_v = [[0] * half for _ in range(2)]
    for idx, (i, j) in enumerate(pairs):
        tbl_i[idx % 2][idx // 2] = i
        tbl_j[idx % 2][idx // 2] = j
        tbl_v[idx % 2][idx // 2] = 1
    bi_tbl = jnp.asarray(tbl_i, dtype=jnp.int32)
    bj_tbl = jnp.asarray(tbl_j, dtype=jnp.int32)
    valid_tbl = jnp.asarray(tbl_v, dtype=jnp.int32)

    itemsize = compute_dtype.itemsize
    steps = len(pairs)
    cost = pl.CostEstimate(
        flops=int(steps * (2 * ti * ti * bc                    # sub + abs
                           + 2 * ti * ti * bc * out_features   # selector matmul
                           + 4 * ti * ti * out_features)),     # exp-sums/accum
        transcendentals=int(steps * ti * ti * out_features),
        bytes_accessed=int(steps * (2 * ti * bc + bc * out_features) * itemsize
                           + 2 * n * out_features * 4),
    )
    vmem_est = (4 * ti * bc * itemsize            # M_i / M_j double-buffered
                + 2 * n * out_features * 4        # resident partial-sum slab
                + 4 * ti * cj * bc * 4            # diff chunk + dot staging
                + (8 << 20))
    # 48 MiB default stays under v7x's 64 MiB/TC; grow only if actually needed.
    vmem_limit = int(max(48 << 20, vmem_est))

    o_partial = pl.pallas_call(
        functools.partial(_pairwise_kernel, block_rows=ti,
                          out_features=out_features, chunk_rows=cj),
        out_shape=jax.ShapeDtypeStruct((2, n, out_features), jnp.float32),
        grid_spec=pltpu.PrefetchScalarGridSpec(
            num_scalar_prefetch=3,
            grid=(2, half),
            in_specs=[
                pl.BlockSpec((ti, bc), lambda c, t, bi, bj, v: (bi[c, t], 0)),
                pl.BlockSpec((ti, bc), lambda c, t, bi, bj, v: (bj[c, t], 0)),
                pl.BlockSpec((bc, out_features),
                             lambda c, t, bi, bj, v: (0, 0)),
            ],
            out_specs=pl.BlockSpec((None, n, out_features),
                                   lambda c, t, bi, bj, v: (c, 0, 0)),
        ),
        compiler_params=pltpu.CompilerParams(
            dimension_semantics=("parallel", "arbitrary"),
            vmem_limit_bytes=vmem_limit,
        ),
        cost_estimate=cost,
    )(bi_tbl, bj_tbl, valid_tbl, m, m, neg_sel)

    # Tiny O(N*(F+B)) epilogue in XLA: combine the two half-triangle slabs,
    # remove the exp(0) self term, optional mean, concat with x.
    o_b = o_partial[0] + o_partial[1] - 1.0
    if mean:
        o_b = o_b * (1.0 / (n - 1))
    return jnp.concatenate([x, o_b], axis=1)


# ------------------------------- reference -------------------------------- #
def _reference(x, T, *, mean=False):
    in_features, b, c = T.shape
    x = x.reshape(-1, in_features)
    n = x.shape[0]
    m = (x @ T.reshape(in_features, b * c)).reshape(n, b, c)
    norm = jnp.abs(m[None, :, :, :] - m[:, None, :, :]).sum(-1)   # (N, N, B)
    o_b = jnp.exp(-norm).sum(0) - 1.0
    if mean:
        o_b = o_b / (n - 1)
    return jnp.concatenate([x, o_b], axis=1)


if __name__ == "__main__":
    # Small shapes; B*C = 128 keeps M exactly one lane-width wide.
    N, IN_FEATURES, OUT_FEATURES, KERNEL_DIMS = 32, 32, 16, 8
    ROW_TILE = 16   # small tile -> real 2x2 block triangle (3 pairs) + padding

    key = jax.random.PRNGKey(0)
    kx, kt = jax.random.split(key)
    # Scale x down so pairwise norms are O(1) and exp(-norm) is numerically
    # meaningful (not all ~0), making the comparison a real test.
    x = 0.05 * jax.random.normal(kx, (N, IN_FEATURES), dtype=jnp.float32)
    T = jax.random.normal(kt, (IN_FEATURES, OUT_FEATURES, KERNEL_DIMS),
                          dtype=jnp.float32)

    for mean in (False, True):
        ref = _reference(x, T, mean=mean)

        # Exact f32 datapath.
        out_f32 = minibatch_discrimination(
            x, T, mean=mean, row_tile=ROW_TILE, chunk_rows=8,
            compute_dtype=jnp.float32)
        out_f32 = jax.block_until_ready(out_f32)
        assert out_f32.shape == (N, IN_FEATURES + OUT_FEATURES), out_f32.shape
        err = float(jnp.max(jnp.abs(out_f32 - ref)))
        assert jnp.allclose(out_f32, ref, rtol=1e-5, atol=1e-5), err

        # Default fast path (bf16 datapath, f32 accumulation): looser tolerance.
        out_bf16 = minibatch_discrimination(
            x, T, mean=mean, row_tile=ROW_TILE, chunk_rows=8)
        out_bf16 = jax.block_until_ready(out_bf16)
        err = float(jnp.max(jnp.abs(out_bf16 - ref)))
        assert jnp.allclose(out_bf16, ref, rtol=5e-2, atol=5e-2), err

    print("KERNEL_OK")
</pallas_src>

<mosaic_0001>
module attributes {stable_mosaic.version = 11 : i64} {
  func.func @_project_kernel(%arg0: i32, %arg1: memref<32x32xf32, #tpu.memory_space<vmem>>, %arg2: memref<32x128xf32, #tpu.memory_space<vmem>>, %arg3: memref<32x128xf32, #tpu.memory_space<vmem>>) attributes {dimension_semantics = [#tpu.dimension_semantics<parallel>], iteration_bounds = array<i64: 1>, scalar_prefetch = 0 : i64, scratch_operands = 0 : i64, tpu.core_type = #tpu.core_type<tc>, window_params = [{transform_indices = @transform_0, window_bounds = array<i64: 32, 32>}, {pipeline_mode = #tpu.pipeline_mode<synchronous>, transform_indices = @transform_1, window_bounds = array<i64: 32, 128>}, {transform_indices = @transform_2, window_bounds = array<i64: 32, 128>}]} {
    %c0 = arith.constant 0 : index
    %c0_0 = arith.constant 0 : index
    %0 = vector.load %arg1[%c0, %c0_0] : memref<32x32xf32, #tpu.memory_space<vmem>>, vector<32x32xf32>
    %c0_1 = arith.constant 0 : index
    %c0_2 = arith.constant 0 : index
    %1 = vector.load %arg2[%c0_1, %c0_2] : memref<32x128xf32, #tpu.memory_space<vmem>>, vector<32x128xf32>
    %cst = arith.constant dense<0.000000e+00> : vector<32x128xf32>
    %2 = tpu.matmul %0, %1, %cst {dimension_numbers = #tpu.dot_dimension_numbers<[1], [0], [0], [1], [0, 0, 1, 1], [], []>} : vector<32x32xf32>, vector<32x128xf32>, vector<32x128xf32> -> vector<32x128xf32>
    %c0_3 = arith.constant 0 : index
    %c0_4 = arith.constant 0 : index
    %3 = vector.load %arg3[%c0_3, %c0_4] : memref<32x128xf32, #tpu.memory_space<vmem>>, vector<32x128xf32>
    tpu.vector_store %arg3[%c0_3, %c0_4], %2 {strides = array<i32>} : memref<32x128xf32, #tpu.memory_space<vmem>>, vector<32x128xf32>,
    return
  }
  func.func @transform_0(%arg0: i32) -> (i32, i32) {
    %c0_i32 = arith.constant 0 : i32
    %c0_i32_0 = arith.constant 0 : i32
    return %arg0, %c0_i32 : i32, i32
  }
  func.func @transform_1(%arg0: i32) -> (i32, i32) {
    %c0_i32 = arith.constant 0 : i32
    %c0_i32_0 = arith.constant 0 : i32
    %c0_i32_1 = arith.constant 0 : i32
    return %c0_i32, %c0_i32_0 : i32, i32
  }
  func.func @transform_2(%arg0: i32) -> (i32, i32) {
    %c0_i32 = arith.constant 0 : i32
    %c0_i32_0 = arith.constant 0 : i32
    return %arg0, %c0_i32 : i32, i32
  }
}

</mosaic_0001>

<llo_original>
// kernel: tpu_custom_call.1
$region0: #{tpu_custom_call.1}
  #allocation0 [shape = 'u32[]', space=smem, size = 0x4, offset = 0x4, fixed_abs, tag = 'smem constant byte address 0x4 - core index']
  #allocation1 [shape = 'u32[144,128]{1,0:T(1,128)}', space=vmem, size = 0x12000, scoped, tag = 'internal scratch']
  %s0 = inlined_call_operand.hbm [shape: f32[32,32], index: 0, kind: input, shape index: {}]
  %s1 = inlined_call_operand.hbm [shape: f32[32,128], index: 1, kind: input, shape index: {}]
  %s2 = inlined_call_operand.hbm [shape: f32[32,128], index: 2, kind: output, shape index: {}]
  %s3 = sld [smem:[#allocation0]]
  $region26: #{tpu_custom_call.1} parent=0
    _
  %s5 = ssub.s32 1, %s3
  %s6 = scalar_select 0, %s5, %s3
  $region1: #{tpu_custom_call.1} parent=0
    #allocation2 [shape = 'u8[16384]{0}', space=vmem, size = 0x4000, scoped, tag = 'input window, operand 0, single buffered']
    #allocation3 [shape = 's32[1]{0}', space=sflag, size = 0x4, scoped, tag = 'scoped memory for tpu_custom_call.1']
    #allocation4 [shape = 's32[1]{0}', space=sflag, size = 0x4, scoped, tag = 'scoped memory for tpu_custom_call.1']
    #allocation5 [shape = 'u8[16384]{0}', space=vmem, size = 0x4000, scoped, tag = 'input window, operand 1, single buffered']
    #allocation6 [shape = 's32[1]{0}', space=sflag, size = 0x4, scoped, tag = 'scoped memory for tpu_custom_call.1']
    #allocation7 [shape = 'u8[16384]{0}', space=vmem, size = 0x4000, scoped, tag = 'output window, operand 0, single buffered']
    %7 = vsyncpa [#allocation3], 0
    %8 = vsyncpa [#allocation6], 0
    %9 = vsyncpa [#allocation4], 0
    // Predicated region
    $region2: #{tpu_custom_call.1} parent=1 // pred_check
      _
    $region3: #{tpu_custom_call.1} parent=1 // pred_check_branch
      %11 = sbr.rel (0) target = $region5
    $region4: #{tpu_custom_call.1} parent=1 // pred_region
      %s13 = ssub.s32 512, 512
      %14 = vsyncadd [#allocation3], %s13
      %s15 = sshll.u32 [#allocation2], 4
      %s16 = int_to_ptr.vmem [resolvable:$true] %s15
      %21 = dma.hbm_to_vmem [thread:$0]  %s0, 512, %s16, [#allocation3], 128, 128, 8
    $region5: #{tpu_custom_call.1} parent=1 // pred_fallthru
      _
    // Predicated region
    $region6: #{tpu_custom_call.1} parent=1 // pred_check
      _
    $region7: #{tpu_custom_call.1} parent=1 // pred_check_branch
      %23 = sbr.rel (0) target = $region9
    $region8: #{tpu_custom_call.1} parent=1 // pred_region
      %s25 = ssub.s32 512, 512
      %26 = vsyncadd [#allocation6], %s25
      %s27 = sshll.u32 [#allocation5], 4
      %s28 = int_to_ptr.vmem [resolvable:$true] %s27
      %33 = dma.hbm_to_vmem [thread:$0]  %s1, 512, %s28, [#allocation6], 128, 128, 8
    $region9: #{tpu_custom_call.1} parent=1 // pred_fallthru
      _
    // Predicated region
    $region10: #{tpu_custom_call.1} parent=1 // pred_check
      _
    $region11: #{tpu_custom_call.1} parent=1 // pred_check_branch
      %35 = sbr.rel (0) target = $region13
    $region12: #{tpu_custom_call.1} parent=1 // pred_region
      %36 = dma.done [#allocation3], 512
    $region13: #{tpu_custom_call.1} parent=1 // pred_fallthru
      _
    // Predicated region
    $region14: #{tpu_custom_call.1} parent=1 // pred_check
      _
    $region15: #{tpu_custom_call.1} parent=1 // pred_check_branch
      %38 = sbr.rel (0) target = $region17
    $region16: #{tpu_custom_call.1} parent=1 // pred_region
      %39 = dma.done [#allocation6], 512
    $region17: #{tpu_custom_call.1} parent=1 // pred_fallthru
      _
    %v40 = vld [vmem:[#allocation2] sm:$0xff]
    %v41 = vld [vmem:[#allocation2 + $0x8] sm:$0xff]
    %v42 = vld [vmem:[#allocation2 + $0x10] sm:$0xff]
    %v43 = vld [vmem:[#allocation2 + $0x18] sm:$0xff]
    %v44 = vld [vmem:[#allocation5] sm:$0xff]
    %v45 = vld [vmem:[#allocation5 + $0x8] sm:$0xff]
    %v46 = vld [vmem:[#allocation5 + $0x10] sm:$0xff]
    %v47 = vld [vmem:[#allocation5 + $0x18] sm:$0xff]
    %vm48 = vcmask 261120
    %v50 = vsel %vm48, %v40, 0
    %v53 = vsel %vm48, %v41, 0
    %v56 = vsel %vm48, %v42, 0
    %v59 = vsel %vm48, %v43, 0
    %61 = vmatprep.subr.mxu0 0.0
    %62 = vmatpush1.msra.mxu0 %v44
    %63 = vmatprep.subr.mxu0 0.0
    %64 = vmatpush1.msra.mxu0 %v45
    %65 = vmatprep.subr.mxu0 0.0
    %66 = vmatpush1.msra.mxu0 %v46
    %67 = vmatprep.subr.mxu0 0.0
    %68 = vmatpush1.msra.mxu0 %v47
    %69 = vmatprep.subr.mxu0 0.0
    %70 = vmatpush1.msra.mxu0 0.0
    %71 = vmatprep.subr.mxu0 0.0
    %72 = vmatpush1.msra.mxu0 0.0
    %73 = vmatprep.subr.mxu0 0.0
    %74 = vmatpush1.msra.mxu0 0.0
    %75 = vmatprep.subr.mxu0 0.0
    %76 = vmatpush1.msra.mxu0 0.0
    %77 = vmatprep.subr.mxu0 0.0
    %78 = vmatpush1.msra.mxu0 0.0
    %79 = vmatprep.subr.mxu0 0.0
    %80 = vmatpush1.msra.mxu0 0.0
    %81 = vmatprep.subr.mxu0 0.0
    %82 = vmatpush1.msra.mxu0 0.0
    %83 = vmatprep.subr.mxu0 0.0
    %84 = vmatpush1.msra.mxu0 0.0
    %85 = vmatprep.subr.mxu0 0.0
    %86 = vmatpush1.msra.mxu0 0.0
    %87 = vmatprep.subr.mxu0 0.0
    %88 = vmatpush1.msra.mxu0 0.0
    %89 = vmatprep.subr.mxu0 0.0
    %90 = vmatpush1.msra.mxu0 0.0
    %91 = vmatprep.subr.mxu0 0.0
    %92 = vmatpush1.msra.mxu0 0.0
    %93 = vmatprep.subr.mxu0 0.0
    %94 = vmatpush1.msra.mxu0 0.0
    %95 = vmatprep.subr.mxu0 0.0
    %96 = vmatpush1.msra.mxu0 0.0
    %97 = vmatprep.subr.mxu0 0.0
    %98 = vmatpush1.msra.mxu0 0.0
    %99 = vmatprep.subr.mxu0 0.0
    %100 = vmatpush1.msra.mxu0 0.0
    %101 = vmatprep.subr.mxu0 0.0
    %102 = vmatpush1.msra.mxu0 0.0
    %103 = vmatprep.subr.mxu0 0.0
    %104 = vmatpush1.msra.mxu0 0.0
    %105 = vmatprep.subr.mxu0 0.0
    %106 = vmatpush1.msra.mxu0 0.0
    %107 = vmatprep.subr.mxu0 0.0
    %108 = vmatpush1.msra.mxu0 0.0
    %109 = vmatprep.subr.mxu0 0.0
    %110 = vmatpush1.msra.mxu0 0.0
    %111 = vmatprep.subr.mxu0 0.0
    %112 = vmatpush1.msra.mxu0 0.0
    %113 = vmatprep.subr.mxu0 0.0
    %114 = vmatpush1.msra.mxu0 0.0
    %115 = vmatprep.subr.mxu0 0.0
    %116 = vmatpush1.msra.mxu0 0.0
    %117 = vmatprep.subr.mxu0 0.0
    %118 = vmatpush1.msra.mxu0 0.0
    %119 = vmatprep.subr.mxu0 0.0
    %120 = vmatpush1.msra.mxu0 0.0
    %121 = vmatprep.subr.mxu0 0.0
    %122 = vmatpush1.msra.mxu0 0.0
    %123 = vmatprep.subr.mxu0 0.0
    %124 = vmatpush1.msra.mxu0 0.0
    %125 = vmatprep.mubr.f32.mxu0 0.0
    %126 = vmatmul.mubr.f32.gmra.mrb[0].mxu0 %v50
    %v127 = vpop.f32.mrb[0].mxu0
    %v128 = vadd.f32 0.0, %v127
    %v129 = vpop.f32.mrb[0].mxu0
    %130 = vmatprep.mubr.f32.mxu0 0.0
    %131 = vmatmul.mubr.f32.gmra.mrb[0].mxu0 %v53
    %v132 = vpop.f32.mrb[0].mxu0
    %v133 = vadd.f32 0.0, %v132
    %v134 = vpop.f32.mrb[0].mxu0
    %135 = vmatprep.mubr.f32.mxu0 0.0
    %136 = vmatmul.mubr.f32.gmra.mrb[0].mxu0 %v56
    %v137 = vpop.f32.mrb[0].mxu0
    %v138 = vadd.f32 0.0, %v137
    %v139 = vpop.f32.mrb[0].mxu0
    %140 = vmatprep.mubr.f32.mxu0 0.0
    %141 = vmatmul.mubr.f32.gmra.mrb[0].mxu0 %v59
    %v142 = vpop.f32.mrb[0].mxu0
    %v143 = vadd.f32 0.0, %v142
    %v144 = vpop.f32.mrb[0].mxu0
    %145 = vdwg.mxu0
    %146 = vst [vmem:[#allocation7] sm:$0xff] %v128
    %147 = vst [vmem:[#allocation7 + $0x8] sm:$0xff] %v133
    %148 = vst [vmem:[#allocation7 + $0x10] sm:$0xff] %v138
    %149 = vst [vmem:[#allocation7 + $0x18] sm:$0xff] %v143
    // Predicated region
    $region18: #{tpu_custom_call.1} parent=1 // pred_check
      _
    $region19: #{tpu_custom_call.1} parent=1 // pred_check_branch
      %151 = sbr.rel (0) target = $region21
    $region20: #{tpu_custom_call.1} parent=1 // pred_region
      %s153 = ssub.s32 512, 512
      %154 = vsyncadd [#allocation4], %s153
      %s155 = sshll.u32 [#allocation7], 4
      %s156 = int_to_ptr.vmem [resolvable:$true] %s155
      %161 = dma.vmem_to_hbm [thread:$0]  %s156, 512, %s2, [#allocation4], 128, 128, 8
    $region21: #{tpu_custom_call.1} parent=1 // pred_fallthru
      _
    // Predicated region
    $region22: #{tpu_custom_call.1} parent=1 // pred_check
      _
    $region23: #{tpu_custom_call.1} parent=1 // pred_check_branch
      %163 = sbr.rel (0) target = $region25
    $region24: #{tpu_custom_call.1} parent=1 // pred_region
      %164 = dma.done [#allocation4], 512
    $region25: #{tpu_custom_call.1} parent=1 // pred_fallthru
      _
    %165 = vsyncpa [#allocation3], 1
    %166 = vsyncpa [#allocation6], 1
    %167 = vsyncpa [#allocation4], 1

</llo_original>
